<compile_context>
chip_gen: v5e
topology: v5e:2x2
jax: 0.10.0
libtpu: 0.0.40
codegen_flags: <defaults>
</compile_context>

<pallas_src>
import jax
import jax.numpy as jnp
from jax.experimental import pallas as pl
from jax.experimental.pallas import tpu as pltpu


def _copy_kernel(x_ref, o_ref):
    # Pure memcpy of one lane-dense (TB, TF) tile: no in-kernel reshape,
    # no cross-tile relayout, just vld/vst at full lane density.
    o_ref[...] = x_ref[...]


def _pick_2d_layout(total):
    """Factor `total` into (rows, cols) with cols a multiple of 128 (lane-dense)."""
    lane = 128
    if total % lane != 0:
        return None
    # Prefer the widest cols that still leaves >= 8 rows (fills all sublanes).
    for cand in (8192, 4096, 2048, 1024, 512, 256, 128):
        if total % cand == 0 and total // cand >= 8:
            return total // cand, cand
    # Tiny arrays: just take the widest lane-dense divisor.
    for cand in (8192, 4096, 2048, 1024, 512, 256, 128):
        if total % cand == 0:
            return total // cand, cand
    return None


def _pick_block(rows, cols, itemsize, max_tile_bytes=4 * 1024 * 1024):
    """Choose (TB, TF) block dims that divide (rows, cols) and satisfy tiling rules."""
    # Lane dim: largest multiple-of-128 divisor of cols (or the full dim).
    tf = cols
    for cand in (8192, 4096, 2048, 1024, 512, 256, 128):
        if cols % cand == 0:
            tf = cand
            break
    # Sublane dim: largest power-of-two multiple-of-8 divisor (or the full dim).
    tb = rows
    for cand in (512, 256, 128, 64, 32, 16, 8):
        if rows % cand == 0:
            tb = cand
            break
    # Keep each tile small enough that 2 buffers x (in tile + out tile) fits
    # comfortably inside the scoped VMEM limit on every TPU generation.
    if tb != rows:  # tb is a power of two >= 8 here, safe to halve
        while tb > 8 and tb * tf * itemsize > max_tile_bytes:
            tb //= 2
    return tb, tf


def null_op(x):
    """Pallas equivalent of NullOp.forward: returns x unchanged (bitwise copy)."""
    orig_shape = x.shape
    total = x.size

    layout = _pick_2d_layout(total)
    if layout is None:
        # Fallback for element counts not divisible by 128: single full block.
        rows, cols = 1, total
    else:
        rows, cols = layout
    x2d = x.reshape(rows, cols)  # free metadata reshape on a contiguous array

    tb, tf = _pick_block(rows, cols, x.dtype.itemsize)
    grid = (rows // tb, cols // tf)

    out2d = pl.pallas_call(
        _copy_kernel,
        out_shape=jax.ShapeDtypeStruct((rows, cols), x.dtype),
        grid_spec=pltpu.PrefetchScalarGridSpec(
            num_scalar_prefetch=0,
            grid=grid,
            in_specs=[pl.BlockSpec((tb, tf), lambda i, j: (i, j))],
            out_specs=pl.BlockSpec((tb, tf), lambda i, j: (i, j)),
        ),
        compiler_params=pltpu.CompilerParams(
            # Both axes independent -> shards across v7x's 2 TensorCores,
            # no-op on v5e/v6e.
            dimension_semantics=("parallel", "parallel"),
            vmem_limit_bytes=32 * 1024 * 1024,
        ),
    )(x2d)

    return out2d.reshape(orig_shape)  # free metadata reshape back


if __name__ == "__main__":
    key = jax.random.PRNGKey(0)
    x = jax.random.normal(key, (2, 4, 16, 16), dtype=jnp.float32)

    out = null_op(x)
    jax.block_until_ready(out)

    # NullOp semantics: output must be identical to the input.
    assert out.shape == x.shape, out.shape
    assert out.dtype == x.dtype
    assert jnp.array_equal(out, x), "mismatch vs identity reference"

    print("KERNEL_OK")
</pallas_src>

<mosaic_0001>
module attributes {stable_mosaic.version = 11 : i64} {
  func.func @_copy_kernel(%arg0: i32, %arg1: i32, %arg2: memref<8x256xf32, #tpu.memory_space<vmem>>, %arg3: memref<8x256xf32, #tpu.memory_space<vmem>>) attributes {dimension_semantics = [#tpu.dimension_semantics<parallel>, #tpu.dimension_semantics<parallel>], iteration_bounds = array<i64: 1, 1>, scalar_prefetch = 0 : i64, scratch_operands = 0 : i64, tpu.core_type = #tpu.core_type<tc>, window_params = [{transform_indices = @transform_0, window_bounds = array<i64: 8, 256>}, {transform_indices = @transform_1, window_bounds = array<i64: 8, 256>}]} {
    %c0 = arith.constant 0 : index
    %c0_0 = arith.constant 0 : index
    %0 = vector.load %arg2[%c0, %c0_0] : memref<8x256xf32, #tpu.memory_space<vmem>>, vector<8x256xf32>
    %c0_1 = arith.constant 0 : index
    %c0_2 = arith.constant 0 : index
    %1 = vector.load %arg3[%c0_1, %c0_2] : memref<8x256xf32, #tpu.memory_space<vmem>>, vector<8x256xf32>
    tpu.vector_store %arg3[%c0_1, %c0_2], %0 {strides = array<i32>} : memref<8x256xf32, #tpu.memory_space<vmem>>, vector<8x256xf32>,
    return
  }
  func.func @transform_0(%arg0: i32, %arg1: i32) -> (i32, i32) {
    %c0_i32 = arith.constant 0 : i32
    return %arg0, %arg1 : i32, i32
  }
  func.func @transform_1(%arg0: i32, %arg1: i32) -> (i32, i32) {
    %c0_i32 = arith.constant 0 : i32
    return %arg0, %arg1 : i32, i32
  }
}

</mosaic_0001>

<llo_original>
// kernel: tpu_custom_call.1
$region0: #{tpu_custom_call.1}
  #allocation0 [shape = 'u32[]', space=smem, size = 0x4, offset = 0x4, fixed_abs, tag = 'smem constant byte address 0x4 - core index']
  #allocation1 [shape = 'u32[72,128]{1,0:T(1,128)}', space=vmem, size = 0x9000, scoped, tag = 'internal scratch']
  %s0 = inlined_call_operand.hbm [shape: f32[8,256], index: 0, kind: input, shape index: {}]
  %s1 = inlined_call_operand.hbm [shape: f32[8,256], index: 1, kind: output, shape index: {}]
  %s2 = sld [smem:[#allocation0]]
  $region18: #{tpu_custom_call.1} parent=0
    _
  %s4 = ssub.s32 1, %s2
  %s5 = scalar_select 0, %s4, %s2
  $region1: #{tpu_custom_call.1} parent=0
    #allocation2 [shape = 'u8[8192]{0}', space=vmem, size = 0x2000, scoped, tag = 'input window, operand 0, single buffered']
    #allocation3 [shape = 's32[1]{0}', space=sflag, size = 0x4, scoped, tag = 'scoped memory for tpu_custom_call.1']
    #allocation4 [shape = 's32[1]{0}', space=sflag, size = 0x4, scoped, tag = 'scoped memory for tpu_custom_call.1']
    #allocation5 [shape = 'u8[8192]{0}', space=vmem, size = 0x2000, scoped, tag = 'output window, operand 0, single buffered']
    %6 = vsyncpa [#allocation3], 0
    %7 = vsyncpa [#allocation4], 0
    // Predicated region
    $region2: #{tpu_custom_call.1} parent=1 // pred_check
      _
    $region3: #{tpu_custom_call.1} parent=1 // pred_check_branch
      %9 = sbr.rel (0) target = $region5
    $region4: #{tpu_custom_call.1} parent=1 // pred_region
      %11 = vsyncadd [#allocation3], 0
      %s13 = sshll.u32 %s0, 4
      %s14 = int_to_ptr.hbm [resolvable:$true] %s13
      %s15 = sshll.u32 [#allocation2], 4
      %s16 = int_to_ptr.vmem [resolvable:$true] %s15
      %18 = dma.hbm_to_vmem [thread:$0]  %s14, 256, %s16, [#allocation3]
    $region5: #{tpu_custom_call.1} parent=1 // pred_fallthru
      _
    // Predicated region
    $region6: #{tpu_custom_call.1} parent=1 // pred_check
      _
    $region7: #{tpu_custom_call.1} parent=1 // pred_check_branch
      %20 = sbr.rel (0) target = $region9
    $region8: #{tpu_custom_call.1} parent=1 // pred_region
      %22 = dma.done [#allocation3], 256
    $region9: #{tpu_custom_call.1} parent=1 // pred_fallthru
      _
    %v23 = vld [vmem:[#allocation2] sm:$0xff]
    %v24 = vld [vmem:[#allocation2 + $0x8] sm:$0xff]
    %25 = vst [vmem:[#allocation5] sm:$0xff] %v23
    %26 = vst [vmem:[#allocation5 + $0x8] sm:$0xff] %v24
    // Predicated region
    $region10: #{tpu_custom_call.1} parent=1 // pred_check
      _
    $region11: #{tpu_custom_call.1} parent=1 // pred_check_branch
      %28 = sbr.rel (0) target = $region13
    $region12: #{tpu_custom_call.1} parent=1 // pred_region
      %30 = vsyncadd [#allocation4], 0
      %s32 = sshll.u32 [#allocation5], 4
      %s33 = int_to_ptr.vmem [resolvable:$true] %s32
      %s34 = sshll.u32 %s1, 4
      %s35 = int_to_ptr.hbm [resolvable:$true] %s34
      %37 = dma.vmem_to_hbm [thread:$0]  %s33, 256, %s35, [#allocation4]
    $region13: #{tpu_custom_call.1} parent=1 // pred_fallthru
      _
    // Predicated region
    $region14: #{tpu_custom_call.1} parent=1 // pred_check
      _
    $region15: #{tpu_custom_call.1} parent=1 // pred_check_branch
      %39 = sbr.rel (0) target = $region17
    $region16: #{tpu_custom_call.1} parent=1 // pred_region
      %41 = dma.done [#allocation4], 256
    $region17: #{tpu_custom_call.1} parent=1 // pred_fallthru
      _
    %42 = vsyncpa [#allocation3], 1
    %43 = vsyncpa [#allocation4], 1

</llo_original>
